<compile_context>
chip_gen: v7x
topology: tpu7x:2x2x1
jax: 0.10.0
libtpu: 0.0.40
codegen_flags: <defaults>
</compile_context>

<pallas_src>
import functools
import math

import jax
import jax.numpy as jnp
import numpy as np
from jax.experimental import pallas as pl
from jax.experimental.pallas import tpu as pltpu


_SQRT1_2 = 0.7071067811865476


def _erf(x):
    # Abramowitz & Stegun 7.1.26 polynomial erf (max abs err ~1.5e-7), built
    # from exp/mul/add only so it lowers cleanly inside Mosaic.
    a1, a2, a3, a4, a5 = (0.254829592, -0.284496736, 1.421413741,
                          -1.453152027, 1.061405429)
    p = 0.3275911
    sgn = jnp.where(x < 0.0, -1.0, 1.0)
    ax = jnp.abs(x)
    t = 1.0 / (1.0 + p * ax)
    poly = ((((a5 * t + a4) * t + a3) * t + a2) * t + a1) * t
    return sgn * (1.0 - poly * jnp.exp(-ax * ax))


def _gelu_exact(x):
    # nn.GELU() default = exact erf form.
    return 0.5 * x * (1.0 + _erf(x * _SQRT1_2))


# --------------------------------------------------------------------------
# Kernel 1: fused DataEmbedding + predict_linear (single grid step)
# --------------------------------------------------------------------------
def _embed_predict_kernel(xcat_ref, pos_ref, wcat_ref, wpred_ref, bpred_ref,
                          o_ref, *, B, L, P):
    # One matmul for [x(t-1) | x(t) | x(t+1) | x_mark(t)] @ stacked weights.
    emb = jnp.dot(xcat_ref[...], wcat_ref[...],
                  preferred_element_type=jnp.float32)          # (B*L, D)
    for b in range(B):                                         # B static & small
        emb_b = emb[b * L:(b + 1) * L, :] + pos_ref[...]
        out_b = jnp.dot(wpred_ref[...], emb_b.astype(jnp.bfloat16),
                        preferred_element_type=jnp.float32) + bpred_ref[...]
        o_ref[b * P:(b + 1) * P, :] = out_b.astype(o_ref.dtype)


@functools.lru_cache(maxsize=None)
def _get_embed_fn(B, L, Cin, Mdim, P, D):
    Kc = 3 * Cin + Mdim
    kern = functools.partial(_embed_predict_kernel, B=B, L=L, P=P)
    pc = pl.pallas_call(
        kern,
        out_shape=jax.ShapeDtypeStruct((B * P, D), jnp.float32),
        grid=(1,),
        in_specs=[
            pl.BlockSpec((B * L, Kc), lambda i: (0, 0)),
            pl.BlockSpec((L, D), lambda i: (0, 0)),
            pl.BlockSpec((Kc, D), lambda i: (0, 0)),
            pl.BlockSpec((P, L), lambda i: (0, 0)),
            pl.BlockSpec((P, 1), lambda i: (0, 0)),
        ],
        out_specs=pl.BlockSpec((B * P, D), lambda i: (0, 0)),
        compiler_params=pltpu.CompilerParams(
            dimension_semantics=("arbitrary",)),
    )

    def fn(x, x_mark, pos, w_cat, w_pred, b_pred):
        # circular k=3 token conv -> roll(+1)/roll(-1) copies concatenated
        xcat = jnp.concatenate(
            [jnp.roll(x, 1, axis=1), x, jnp.roll(x, -1, axis=1), x_mark],
            axis=-1).astype(jnp.bfloat16).reshape(B * L, Kc)
        out = pc(xcat, pos, w_cat, w_pred, b_pred)
        return out.reshape(B, P, D)

    return jax.jit(fn)


# --------------------------------------------------------------------------
# Kernel 2: TimesBlock branch — Conv2d(3x3) -> GELU -> Conv2d(3x3)
#           as two im2col MXU matmuls on a batch-stacked flat slab.
# --------------------------------------------------------------------------
def _times_block_kernel(x_ref, w1_ref, b1_ref, w2_ref, b2_ref, o_ref,
                        *, M, H, W, W8, off):
    row = jax.lax.broadcasted_iota(jnp.int32, (M, 1), 0)
    col = row % W8
    m_left = col != 0                       # output col 0 has no (kw=0) neighbour
    m_right = col != (W8 - 1)               # output col W8-1 has no (kw=2) one
    # positions belonging to the real (H x W) images (drop pad cols / sep rows)
    m_valid = jnp.logical_and(col < W, (row // W8) % (H + 1) < H)

    def conv3x3(src, w_ref):
        # im2col: 9 row-shifted (M, C) slabs -> (M, 9*C), ONE matmul (K=9*C)
        taps = []
        for kh in range(3):
            for kw in range(3):
                s = off - W8 - 1 + kh * W8 + kw
                slab = src[s:s + M, :]
                if kw == 0:
                    slab = jnp.where(m_left, slab, jnp.zeros_like(slab))
                elif kw == 2:
                    slab = jnp.where(m_right, slab, jnp.zeros_like(slab))
                taps.append(slab)
        patches = jnp.concatenate(taps, axis=-1)               # (M, 9*C) bf16
        return jnp.dot(patches, w_ref[...],
                       preferred_element_type=jnp.float32)

    xsrc = x_ref[...].astype(jnp.bfloat16)                     # (Lp, Cin)
    h1 = conv3x3(xsrc, w1_ref) + b1_ref[...]                   # (M, Cff) f32
    h1 = _gelu_exact(h1)
    # zero everything outside the real images so conv2 sees proper 'same'
    # zero padding at image edges / pad columns / batch separator rows
    h1 = jnp.where(m_valid, h1, 0.0).astype(jnp.bfloat16)
    zpad = jnp.zeros((off, h1.shape[-1]), jnp.bfloat16)
    mid = jnp.concatenate([zpad, h1, zpad], axis=0)            # (Lp, Cff)
    h2 = conv3x3(mid, w2_ref) + b2_ref[...]                    # (M, Cin) f32
    o_ref[...] = h2.astype(o_ref.dtype)


@functools.lru_cache(maxsize=None)
def _get_conv_block_fn(B, T, N, W, Cff):
    H = -(-T // W)                       # ceil(T / period)
    W8 = ((W + 7) // 8) * 8              # bucketed / lane-friendly width
    off = W8 + 8                         # 8-aligned halo (>= W8+1 tap reach)
    M = B * (H + 1) * W8                 # batch stacked + 1 separator row each
    Lp = M + 2 * off
    kern = functools.partial(_times_block_kernel, M=M, H=H, W=W, W8=W8, off=off)
    pc = pl.pallas_call(
        kern,
        out_shape=jax.ShapeDtypeStruct((M, N), jnp.float32),
        grid=(1,),
        in_specs=[
            pl.BlockSpec((Lp, N), lambda i: (0, 0)),
            pl.BlockSpec((9 * N, Cff), lambda i: (0, 0)),
            pl.BlockSpec((1, Cff), lambda i: (0, 0)),
            pl.BlockSpec((9 * Cff, N), lambda i: (0, 0)),
            pl.BlockSpec((1, N), lambda i: (0, 0)),
        ],
        out_specs=pl.BlockSpec((M, N), lambda i: (0, 0)),
        compiler_params=pltpu.CompilerParams(
            dimension_semantics=("arbitrary",),
            vmem_limit_bytes=64 * 1024 * 1024),
    )

    def fn(x, w1f, b1, w2f, b2):
        # Build the zero-padded, batch-stacked flat image in XLA (fused under jit):
        #   time-pad to H*W rows, reshape (H, W), pad width to W8, add one zero
        #   separator row per image, flatten, add off-row halos top & bottom.
        xp = jnp.pad(x, ((0, 0), (0, H * W - T), (0, 0)))
        img = xp.reshape(B, H, W, N)
        img = jnp.pad(img, ((0, 0), (0, 1), (0, W8 - W), (0, 0)))
        flat = jnp.pad(img.reshape(M, N), ((off, off), (0, 0)))
        out = pc(flat, w1f, b1, w2f, b2)
        out = out.reshape(B, H + 1, W8, N)[:, :H, :W, :]
        return out.reshape(B, H * W, N)[:, :T, :]

    return jax.jit(fn)


# --------------------------------------------------------------------------
# Model glue (parameter setup, FFT period selection)
# --------------------------------------------------------------------------
def _sinusoid_pe(max_len, d_model):
    pe = np.zeros((max_len, d_model), dtype=np.float32)
    position = np.arange(max_len, dtype=np.float32)[:, None]
    div_term = np.exp(np.arange(0, d_model, 2, dtype=np.float32)
                      * (-math.log(10000.0) / d_model))
    pe[:, 0::2] = np.sin(position * div_term)
    pe[:, 1::2] = np.cos(position * div_term)
    return jnp.asarray(pe)


def _fft_periods(x, k):
    """Reproduces FFT(): top-k frequency indices -> periods.  Periods fix the
    reshape/conv shapes, so they must be concrete ints; layer i's periods
    depend on layer i-1's output -> one small host pull per layer (inherent to
    the reference's data-dependent control flow)."""
    T = x.shape[1]
    xf = jnp.fft.rfft(x, axis=1)                  # (B, F, N) complex
    freq = jnp.abs(xf).mean(axis=0).mean(axis=1)  # (F,)
    freq = freq.at[0].set(0.0)
    _, top_idx = jax.lax.top_k(freq, k)
    top_idx = np.asarray(jax.device_get(top_idx))
    periods = []
    for f in top_idx:
        f = max(int(f), 1)                        # guard degenerate spectrum
        periods.append(max(1, min(T, T // f)))
    # NOTE: the reference computes softmax(period_weight) but never applies it
    # (it multiplies the stacked branches by the raw last `period` scalar), so
    # it does not affect the output and is skipped here.
    return periods


class TimesNetPallas:
    # TODO(synk): DataEmbedding source was not provided; implemented the
    # standard TokenEmbedding(Conv1d k=3, circular pad, no bias) + sinusoidal
    # positional embedding + time-feature Linear (no bias); dropout omitted
    # (eval mode).
    def __init__(self, seq, pred, fin, fout, mark_dim=4, d_model=32, d_ff=32,
                 layers=2, k=2, kernel_size=3, key=None):
        assert kernel_size == 3, "conv kernels are specialized to 3x3"
        self.seq, self.pred = seq, pred
        self.fin, self.fout, self.mark_dim = fin, fout, mark_dim
        self.d_model, self.d_ff = d_model, d_ff
        self.layers, self.k = layers, k

        if key is None:
            key = jax.random.PRNGKey(42)
        ks = iter(jax.random.split(key, 8 + 4 * layers))

        def init(shape, fan_in):
            return (jax.random.normal(next(ks), shape, jnp.float32)
                    * (0.3 / math.sqrt(fan_in)))

        bf16 = jnp.bfloat16
        # MXU operands in bf16; biases / elementwise math stay f32.
        w_tok = init((3, fin, d_model), 3 * fin)         # circular Conv1d taps
        w_temp = init((mark_dim, d_model), mark_dim)     # time-feature linear
        self.w_cat = jnp.concatenate(
            [w_tok.reshape(3 * fin, d_model), w_temp], axis=0).astype(bf16)
        self.pos_emb = _sinusoid_pe(max(seq, pred) + 8, d_model)
        # predict_linear: nn.Linear(seq, pred), weight stored (out, in)
        self.w_pred = init((pred, seq), seq).astype(bf16)
        self.b_pred = init((pred,), seq).reshape(pred, 1)
        # blocks: Conv2d(d_model->d_ff,3x3) -> GELU -> Conv2d(d_ff->d_model,3x3)
        # weights pre-reshaped to (9*Cin, Cout) for the im2col matmul.
        self.blocks = []
        for _ in range(layers):
            self.blocks.append(dict(
                w1f=init((3, 3, d_model, d_ff), 9 * d_model)
                    .reshape(9 * d_model, d_ff).astype(bf16),
                b1=init((d_ff,), 9 * d_model).reshape(1, d_ff),
                w2f=init((3, 3, d_ff, d_model), 9 * d_ff)
                    .reshape(9 * d_ff, d_model).astype(bf16),
                b2=init((d_model,), 9 * d_ff).reshape(1, d_model),
            ))
        # projection: nn.Linear(d_model, fout) — tiny (fout=4), left to XLA.
        self.w_proj = init((d_model, fout), d_model)
        self.b_proj = init((fout,), d_model)

    # ----- one TimesBlock -----
    def _block(self, x, p):
        B, T, N = x.shape
        periods = _fft_periods(x, self.k)
        res_sum = jnp.zeros_like(x)
        for period in periods:
            fn = _get_conv_block_fn(B, T, N, int(period), self.d_ff)
            res_sum = res_sum + fn(x, p["w1f"], p["b1"], p["w2f"], p["b2"])
        # Reference does `torch.sum(res * period, dim=-1)` where `period` is the
        # raw scalar left from the LAST loop iteration (the softmaxed
        # period_weight is computed but unused) -> scale summed branches by it.
        return res_sum * float(periods[-1]) + x

    # ----- full forward -----
    def __call__(self, x, x_mark):
        B, L, Cin = x.shape
        fn = _get_embed_fn(B, L, Cin, self.mark_dim, self.pred, self.d_model)
        h = fn(x, x_mark, self.pos_emb[:L], self.w_cat,
               self.w_pred, self.b_pred)                       # (B, pred, D)
        for i in range(self.layers):
            h = self._block(h, self.blocks[i])
        # projection: fout=4 (<<128 lanes), FLOPs trivial -> plain XLA dot.
        return jnp.dot(h, self.w_proj) + self.b_proj


# --------------------------------------------------------------------------
if __name__ == "__main__":
    B, seq, pred = 2, 8, 16
    fin, fout, mark_dim = 4, 4, 4

    model = TimesNetPallas(seq=seq, pred=pred, fin=fin, fout=fout,
                           mark_dim=mark_dim, d_model=32, d_ff=32,
                           layers=2, k=2, kernel_size=3,
                           key=jax.random.PRNGKey(7))

    key = jax.random.PRNGKey(0)
    kx, km = jax.random.split(key)
    x = jax.random.normal(kx, (B, seq, fin), jnp.float32)
    x_mark = jax.random.normal(km, (B, seq, mark_dim), jnp.float32)

    y = model(x, x_mark)
    jax.block_until_ready(y)
    assert y.shape == (B, pred, fout), y.shape
    assert bool(jnp.all(jnp.isfinite(y)))
    print("KERNEL_OK")
</pallas_src>

<mosaic_0001>
module attributes {stable_mosaic.version = 11 : i64} {
  func.func @_embed_predict_kernel(%arg0: i32, %arg1: memref<16x16xbf16, #tpu.memory_space<vmem>>, %arg2: memref<8x32xf32, #tpu.memory_space<vmem>>, %arg3: memref<16x32xbf16, #tpu.memory_space<vmem>>, %arg4: memref<16x8xbf16, #tpu.memory_space<vmem>>, %arg5: memref<16x1xf32, #tpu.memory_space<vmem>>, %arg6: memref<32x32xf32, #tpu.memory_space<vmem>>) attributes {dimension_semantics = [#tpu.dimension_semantics<arbitrary>], iteration_bounds = array<i64: 1>, scalar_prefetch = 0 : i64, scratch_operands = 0 : i64, tpu.core_type = #tpu.core_type<tc>, window_params = [{pipeline_mode = #tpu.pipeline_mode<synchronous>, transform_indices = @transform_0, window_bounds = array<i64: 16, 16>}, {pipeline_mode = #tpu.pipeline_mode<synchronous>, transform_indices = @transform_1, window_bounds = array<i64: 8, 32>}, {pipeline_mode = #tpu.pipeline_mode<synchronous>, transform_indices = @transform_2, window_bounds = array<i64: 16, 32>}, {pipeline_mode = #tpu.pipeline_mode<synchronous>, transform_indices = @transform_3, window_bounds = array<i64: 16, 8>}, {pipeline_mode = #tpu.pipeline_mode<synchronous>, transform_indices = @transform_4, window_bounds = array<i64: 16, 1>}, {pipeline_mode = #tpu.pipeline_mode<synchronous>, transform_indices = @transform_5, window_bounds = array<i64: 32, 32>}]} {
    %c0 = arith.constant 0 : index
    %c0_0 = arith.constant 0 : index
    %0 = vector.load %arg1[%c0, %c0_0] : memref<16x16xbf16, #tpu.memory_space<vmem>>, vector<16x16xbf16>
    %c0_1 = arith.constant 0 : index
    %c0_2 = arith.constant 0 : index
    %1 = vector.load %arg3[%c0_1, %c0_2] : memref<16x32xbf16, #tpu.memory_space<vmem>>, vector<16x32xbf16>
    %cst = arith.constant dense<0.000000e+00> : vector<16x32xf32>
    %2 = tpu.matmul %0, %1, %cst {dimension_numbers = #tpu.dot_dimension_numbers<[1], [0], [0], [1], [0, 0, 1, 1], [], []>} : vector<16x16xbf16>, vector<16x32xbf16>, vector<16x32xf32> -> vector<16x32xf32>
    %3 = vector.extract_strided_slice %2 {offsets = [0, 0], sizes = [8, 32], strides = [1, 1]} : vector<16x32xf32> to vector<8x32xf32>
    %c0_3 = arith.constant 0 : index
    %c0_4 = arith.constant 0 : index
    %4 = vector.load %arg2[%c0_3, %c0_4] : memref<8x32xf32, #tpu.memory_space<vmem>>, vector<8x32xf32>
    %5 = arith.addf %3, %4 : vector<8x32xf32>
    %c0_5 = arith.constant 0 : index
    %c0_6 = arith.constant 0 : index
    %6 = vector.load %arg4[%c0_5, %c0_6] : memref<16x8xbf16, #tpu.memory_space<vmem>>, vector<16x8xbf16>
    %7 = arith.truncf %5 : vector<8x32xf32> to vector<8x32xbf16>
    %cst_7 = arith.constant dense<0.000000e+00> : vector<16x32xf32>
    %8 = tpu.matmul %6, %7, %cst_7 {dimension_numbers = #tpu.dot_dimension_numbers<[1], [0], [0], [1], [0, 0, 1, 1], [], []>} : vector<16x8xbf16>, vector<8x32xbf16>, vector<16x32xf32> -> vector<16x32xf32>
    %c0_8 = arith.constant 0 : index
    %c0_9 = arith.constant 0 : index
    %9 = vector.load %arg5[%c0_8, %c0_9] : memref<16x1xf32, #tpu.memory_space<vmem>>, vector<16x1xf32>
    %10 = vector.broadcast %9 : vector<16x1xf32> to vector<16x32xf32>
    %11 = arith.addf %8, %10 : vector<16x32xf32>
    %c0_10 = arith.constant 0 : index
    %c0_11 = arith.constant 0 : index
    %12 = vector.load %arg6[%c0_10, %c0_11] : memref<32x32xf32, #tpu.memory_space<vmem>>, vector<16x32xf32>
    tpu.vector_store %arg6[%c0_10, %c0_11], %11 {strides = array<i32>} : memref<32x32xf32, #tpu.memory_space<vmem>>, vector<16x32xf32>,
    %13 = vector.extract_strided_slice %2 {offsets = [8, 0], sizes = [8, 32], strides = [1, 1]} : vector<16x32xf32> to vector<8x32xf32>
    %c0_12 = arith.constant 0 : index
    %c0_13 = arith.constant 0 : index
    %14 = vector.load %arg2[%c0_12, %c0_13] : memref<8x32xf32, #tpu.memory_space<vmem>>, vector<8x32xf32>
    %15 = arith.addf %13, %14 : vector<8x32xf32>
    %c0_14 = arith.constant 0 : index
    %c0_15 = arith.constant 0 : index
    %16 = vector.load %arg4[%c0_14, %c0_15] : memref<16x8xbf16, #tpu.memory_space<vmem>>, vector<16x8xbf16>
    %17 = arith.truncf %15 : vector<8x32xf32> to vector<8x32xbf16>
    %cst_16 = arith.constant dense<0.000000e+00> : vector<16x32xf32>
    %18 = tpu.matmul %16, %17, %cst_16 {dimension_numbers = #tpu.dot_dimension_numbers<[1], [0], [0], [1], [0, 0, 1, 1], [], []>} : vector<16x8xbf16>, vector<8x32xbf16>, vector<16x32xf32> -> vector<16x32xf32>
    %c0_17 = arith.constant 0 : index
    %c0_18 = arith.constant 0 : index
    %19 = vector.load %arg5[%c0_17, %c0_18] : memref<16x1xf32, #tpu.memory_space<vmem>>, vector<16x1xf32>
    %20 = vector.broadcast %19 : vector<16x1xf32> to vector<16x32xf32>
    %21 = arith.addf %18, %20 : vector<16x32xf32>
    %c16 = arith.constant 16 : index
    %c0_19 = arith.constant 0 : index
    %22 = vector.load %arg6[%c16, %c0_19] : memref<32x32xf32, #tpu.memory_space<vmem>>, vector<16x32xf32>
    tpu.vector_store %arg6[%c16, %c0_19], %21 {strides = array<i32>} : memref<32x32xf32, #tpu.memory_space<vmem>>, vector<16x32xf32>,
    return
  }
  func.func @transform_0(%arg0: i32) -> (i32, i32) {
    %c0_i32 = arith.constant 0 : i32
    %c0_i32_0 = arith.constant 0 : i32
    %c0_i32_1 = arith.constant 0 : i32
    return %c0_i32, %c0_i32_0 : i32, i32
  }
  func.func @transform_1(%arg0: i32) -> (i32, i32) {
    %c0_i32 = arith.constant 0 : i32
    %c0_i32_0 = arith.constant 0 : i32
    %c0_i32_1 = arith.constant 0 : i32
    return %c0_i32, %c0_i32_0 : i32, i32
  }
  func.func @transform_2(%arg0: i32) -> (i32, i32) {
    %c0_i32 = arith.constant 0 : i32
    %c0_i32_0 = arith.constant 0 : i32
    %c0_i32_1 = arith.constant 0 : i32
    return %c0_i32, %c0_i32_0 : i32, i32
  }
  func.func @transform_3(%arg0: i32) -> (i32, i32) {
    %c0_i32 = arith.constant 0 : i32
    %c0_i32_0 = arith.constant 0 : i32
    %c0_i32_1 = arith.constant 0 : i32
    return %c0_i32, %c0_i32_0 : i32, i32
  }
  func.func @transform_4(%arg0: i32) -> (i32, i32) {
    %c0_i32 = arith.constant 0 : i32
    %c0_i32_0 = arith.constant 0 : i32
    %c0_i32_1 = arith.constant 0 : i32
    return %c0_i32, %c0_i32_0 : i32, i32
  }
  func.func @transform_5(%arg0: i32) -> (i32, i32) {
    %c0_i32 = arith.constant 0 : i32
    %c0_i32_0 = arith.constant 0 : i32
    %c0_i32_1 = arith.constant 0 : i32
    return %c0_i32, %c0_i32_0 : i32, i32
  }
}

</mosaic_0001>

<llo_original>
// kernel: fn.1
$region0: #{fn.1}
  #allocation0 [shape = 'u32[]', space=smem, size = 0x4, offset = 0x4, fixed_abs, tag = 'smem constant byte address 0x4 - core index']
  #allocation1 [shape = 'u32[144,128]{1,0:T(1,128)}', space=vmem, size = 0x12000, scoped, tag = 'internal scratch']
  %s0 = inlined_call_operand.vmem [shape: bf16[16,16], index: 0, kind: input, shape index: {}]
  %s1 = inlined_call_operand.vmem [shape: f32[8,32], index: 1, kind: input, shape index: {}]
  %s2 = inlined_call_operand.vmem [shape: bf16[16,32], index: 2, kind: input, shape index: {}]
  %s3 = inlined_call_operand.vmem [shape: bf16[16,8], index: 3, kind: input, shape index: {}]
  %s4 = inlined_call_operand.vmem [shape: f32[16,1], index: 4, kind: input, shape index: {}]
  %s5 = inlined_call_operand.hbm [shape: f32[32,32], index: 5, kind: output, shape index: {}]
  %s6 = sld [smem:[#allocation0]]
  $region30: #{fn.1} parent=0
    _
  %s8 = ssub.s32 1, %s6
  %s9 = scalar_select 0, %s8, %s6
  $region1: #{fn.1} parent=0
    #allocation2 [shape = 'u8[16384]{0}', space=vmem, size = 0x4000, scoped, tag = 'output window, operand 0, single buffered']
    #allocation3 [shape = 's32[1]{0}', space=sflag, size = 0x4, scoped, tag = 'scoped memory for fn.1']
    %10 = vsyncpa [#allocation3], 0
    // Predicated region
    $region2: #{fn.1} parent=1 // pred_check
      _
    $region3: #{fn.1} parent=1 // pred_check_branch
      %12 = sbr.rel (0) target = $region5
    $region4: #{fn.1} parent=1 // pred_region
      _
    $region5: #{fn.1} parent=1 // pred_fallthru
      _
    // Predicated region
    $region6: #{fn.1} parent=1 // pred_check
      _
    $region7: #{fn.1} parent=1 // pred_check_branch
      %14 = sbr.rel (0) target = $region9
    $region8: #{fn.1} parent=1 // pred_region
      _
    $region9: #{fn.1} parent=1 // pred_fallthru
      _
    // Predicated region
    $region10: #{fn.1} parent=1 // pred_check
      _
    $region11: #{fn.1} parent=1 // pred_check_branch
      %16 = sbr.rel (0) target = $region13
    $region12: #{fn.1} parent=1 // pred_region
      _
    $region13: #{fn.1} parent=1 // pred_fallthru
      _
    // Predicated region
    $region14: #{fn.1} parent=1 // pred_check
      _
    $region15: #{fn.1} parent=1 // pred_check_branch
      %18 = sbr.rel (0) target = $region17
    $region16: #{fn.1} parent=1 // pred_region
      _
    $region17: #{fn.1} parent=1 // pred_fallthru
      _
    // Predicated region
    $region18: #{fn.1} parent=1 // pred_check
      _
    $region19: #{fn.1} parent=1 // pred_check_branch
      %20 = sbr.rel (0) target = $region21
    $region20: #{fn.1} parent=1 // pred_region
      _
    $region21: #{fn.1} parent=1 // pred_fallthru
      _
    %v22 = vld [vmem:[%s0] sm:$0xf]
    %v23 = vld [vmem:[%s0 + $0x4] sm:$0xf]
    %v24 = vld [vmem:[%s2] sm:$0xf]
    %v25 = vld [vmem:[%s2 + $0x4] sm:$0xf]
    %v28 = vunpack.c.l.b16 %v22
    %v29 = vunpack.c.l.b16 %v23
    %v30 = vpack.c.b16 %v29, %v28
    %v33 = vunpack.c.l.b16 %v24
    %v34 = vunpack.c.l.b16 %v25
    %v35 = vpack.c.b16 %v34, %v33
    %vm37 = vcmask 130048
    %v39 = vsel %vm37, %v30, 0
    %41 = vmatprep.subr.bf16.mxu0 0
    %42 = vmatpush1.bf16.msra.mxu0 %v35
    %43 = vmatprep.subr.bf16.mxu0 0
    %44 = vmatpush1.bf16.msra.mxu0 0
    %45 = vmatprep.subr.bf16.mxu0 0
    %46 = vmatpush1.bf16.msra.mxu0 0
    %47 = vmatprep.subr.bf16.mxu0 0
    %48 = vmatpush1.bf16.msra.mxu0 0
    %49 = vmatprep.subr.bf16.mxu0 0
    %50 = vmatpush1.bf16.msra.mxu0 0
    %51 = vmatprep.subr.bf16.mxu0 0
    %52 = vmatpush1.bf16.msra.mxu0 0
    %53 = vmatprep.subr.bf16.mxu0 0
    %54 = vmatpush1.bf16.msra.mxu0 0
    %55 = vmatprep.subr.bf16.mxu0 0
    %56 = vmatpush1.bf16.msra.mxu0 0
    %57 = vmatprep.subr.bf16.mxu0 0
    %58 = vmatpush1.bf16.msra.mxu0 0
    %59 = vmatprep.subr.bf16.mxu0 0
    %60 = vmatpush1.bf16.msra.mxu0 0
    %61 = vmatprep.subr.bf16.mxu0 0
    %62 = vmatpush1.bf16.msra.mxu0 0
    %63 = vmatprep.subr.bf16.mxu0 0
    %64 = vmatpush1.bf16.msra.mxu0 0
    %65 = vmatprep.subr.bf16.mxu0 0
    %66 = vmatpush1.bf16.msra.mxu0 0
    %67 = vmatprep.subr.bf16.mxu0 0
    %68 = vmatpush1.bf16.msra.mxu0 0
    %69 = vmatprep.subr.bf16.mxu0 0
    %70 = vmatpush1.bf16.msra.mxu0 0
    %71 = vmatprep.subr.bf16.mxu0 0
    %72 = vmatpush1.bf16.msra.mxu0 0
    %73 = vmatprep.mubr.bf16.mxu0 0
    %74 = vmatmul.mubr.bf16.gmra.mrb[0].mxu0 %v39
    %v75 = vpop.f32.mrb[0].mxu0
    %v76 = vadd.f32 0.0, %v75
    %v77 = vpop.f32.mrb[0].mxu0
    %v78 = vpop.f32.mrb[0].mxu0
    %v79 = vadd.f32 0.0, %v78
    %v80 = vpop.f32.mrb[0].mxu0
    %81 = vdwg.mxu0
    %v82 = vld [vmem:[%s1] sm:$0xff]
    %v83 = vadd.f32 %v76, %v82
    %v84 = vld [vmem:[%s3] sm:$0xf]
    %v85 = vld [vmem:[%s3 + $0x4] sm:$0xf]
    %v86 = vpack.c.bf16 %v83, %v83
    %v87 = vld [vmem:[%s4] sm:$0xff]
    %v88 = vld [vmem:[%s4 + $0x8] sm:$0xff]
    %90 = vset.pattern.permute.xlu0 0
    %91 = vperm.xlu0 %90, %v87
    %v92 = vpop.permute.xlu0 %91
    %95 = vset.pattern.permute.xlu0 0
    %96 = vperm.xlu0 %95, %v88
    %v97 = vpop.permute.xlu0 %96
    %v101 = vunpack.c.l.b16 %v84
    %v102 = vunpack.c.l.b16 %v85
    %v103 = vpack.c.b16 %v102, %v101
    %vm104 = vcmask 64512
    %v106 = vsel %vm104, %v103, 0
    %vm108 = vcmask 1043456
    %v110 = vsel %vm108, %v86, 0
    %112 = vmatprep.subr.bf16.mxu0 0
    %113 = vmatpush1.bf16.msra.mxu0 %v110
    %114 = vmatprep.subr.bf16.mxu0 0
    %115 = vmatpush1.bf16.msra.mxu0 0
    %116 = vmatprep.subr.bf16.mxu0 0
    %117 = vmatpush1.bf16.msra.mxu0 0
    %118 = vmatprep.subr.bf16.mxu0 0
    %119 = vmatpush1.bf16.msra.mxu0 0
    %120 = vmatprep.subr.bf16.mxu0 0
    %121 = vmatpush1.bf16.msra.mxu0 0
    %122 = vmatprep.subr.bf16.mxu0 0
    %123 = vmatpush1.bf16.msra.mxu0 0
    %124 = vmatprep.subr.bf16.mxu0 0
    %125 = vmatpush1.bf16.msra.mxu0 0
    %126 = vmatprep.subr.bf16.mxu0 0
    %127 = vmatpush1.bf16.msra.mxu0 0
    %128 = vmatprep.subr.bf16.mxu0 0
    %129 = vmatpush1.bf16.msra.mxu0 0
    %130 = vmatprep.subr.bf16.mxu0 0
    %131 = vmatpush1.bf16.msra.mxu0 0
    %132 = vmatprep.subr.bf16.mxu0 0
    %133 = vmatpush1.bf16.msra.mxu0 0
    %134 = vmatprep.subr.bf16.mxu0 0
    %135 = vmatpush1.bf16.msra.mxu0 0
    %136 = vmatprep.subr.bf16.mxu0 0
    %137 = vmatpush1.bf16.msra.mxu0 0
    %138 = vmatprep.subr.bf16.mxu0 0
    %139 = vmatpush1.bf16.msra.mxu0 0
    %140 = vmatprep.subr.bf16.mxu0 0
    %141 = vmatpush1.bf16.msra.mxu0 0
    %142 = vmatprep.subr.bf16.mxu0 0
    %143 = vmatpush1.bf16.msra.mxu0 0
    %144 = vmatprep.mubr.bf16.mxu0 0
    %145 = vmatmul.mubr.bf16.gmra.mrb[0].mxu0 %v106
    %v146 = vpop.f32.mrb[0].mxu0
    %v147 = vadd.f32 %v92, %v146
    %v148 = vpop.f32.mrb[0].mxu0
    %v149 = vpop.f32.mrb[0].mxu0
    %v150 = vadd.f32 %v97, %v149
    %v151 = vpop.f32.mrb[0].mxu0
    %152 = vdwg.mxu0
    %vm153 = vcmask 261120
    %154 = vst.msk [vmem:[#allocation2] sm:$0xff] %vm153, %v147
    %155 = vst.msk [vmem:[#allocation2 + $0x8] sm:$0xff] %vm153, %v150
    %v156 = vld [vmem:[%s1] sm:$0xff]
    %v157 = vadd.f32 %v79, %v156
    %v158 = vld [vmem:[%s3] sm:$0xf]
    %v159 = vld [vmem:[%s3 + $0x4] sm:$0xf]
    %v160 = vpack.c.bf16 %v157, %v157
    %v161 = vld [vmem:[%s4] sm:$0xff]
    %v162 = vld [vmem:[%s4 + $0x8] sm:$0xff]
    %164 = vset.pattern.permute.xlu0 0
    %165 = vperm.xlu0 %164, %v161
    %v166 = vpop.permute.xlu0 %165
    %169 = vset.pattern.permute.xlu0 0
    %170 = vperm.xlu0 %169, %v162
    %v171 = vpop.permute.xlu0 %170
    %v175 = vunpack.c.l.b16 %v158
    %v176 = vunpack.c.l.b16 %v159
    %v177 = vpack.c.b16 %v176, %v175
    %v179 = vsel %vm104, %v177, 0
    %v182 = vsel %vm108, %v160, 0
    %184 = vmatprep.subr.bf16.mxu0 0
    %185 = vmatpush1.bf16.msra.mxu0 %v182
    %186 = vmatprep.subr.bf16.mxu0 0
    %187 = vmatpush1.bf16.msra.mxu0 0
    %188 = vmatprep.subr.bf16.mxu0 0
    %189 = vmatpush1.bf16.msra.mxu0 0
    %190 = vmatprep.subr.bf16.mxu0 0
    %191 = vmatpush1.bf16.msra.mxu0 0
    %192 = vmatprep.subr.bf16.mxu0 0
    %193 = vmatpush1.bf16.msra.mxu0 0
    %194 = vmatprep.subr.bf16.mxu0 0
    %195 = vmatpush1.bf16.msra.mxu0 0
    %196 = vmatprep.subr.bf16.mxu0 0
    %197 = vmatpush1.bf16.msra.mxu0 0
    %198 = vmatprep.subr.bf16.mxu0 0
    %199 = vmatpush1.bf16.msra.mxu0 0
    %200 = vmatprep.subr.bf16.mxu0 0
    %201 = vmatpush1.bf16.msra.mxu0 0
    %202 = vmatprep.subr.bf16.mxu0 0
    %203 = vmatpush1.bf16.msra.mxu0 0
    %204 = vmatprep.subr.bf16.mxu0 0
    %205 = vmatpush1.bf16.msra.mxu0 0
    %206 = vmatprep.subr.bf16.mxu0 0
    %207 = vmatpush1.bf16.msra.mxu0 0
    %208 = vmatprep.subr.bf16.mxu0 0
    %209 = vmatpush1.bf16.msra.mxu0 0
    %210 = vmatprep.subr.bf16.mxu0 0
    %211 = vmatpush1.bf16.msra.mxu0 0
    %212 = vmatprep.subr.bf16.mxu0 0
    %213 = vmatpush1.bf16.msra.mxu0 0
    %214 = vmatprep.subr.bf16.mxu0 0
    %215 = vmatpush1.bf16.msra.mxu0 0
    %216 = vmatprep.mubr.bf16.mxu0 0
    %217 = vmatmul.mubr.bf16.gmra.mrb[0].mxu0 %v179
    %v218 = vpop.f32.mrb[0].mxu0
    %v219 = vadd.f32 %v166, %v218
    %v220 = vpop.f32.mrb[0].mxu0
    %v221 = vpop.f32.mrb[0].mxu0
    %v222 = vadd.f32 %v171, %v221
    %v223 = vpop.f32.mrb[0].mxu0
    %224 = vdwg.mxu0
    %225 = vst.msk [vmem:[#allocation2 + $0x10] sm:$0xff] %vm153, %v219
    %226 = vst.msk [vmem:[#allocation2 + $0x18] sm:$0xff] %vm153, %v222
    // Predicated region
    $region22: #{fn.1} parent=1 // pred_check
      _
    $region23: #{fn.1} parent=1 // pred_check_branch
      %228 = sbr.rel (0) target = $region25
    $region24: #{fn.1} parent=1 // pred_region
      %s230 = ssub.s32 512, 512
      %231 = vsyncadd [#allocation3], %s230
      %s232 = sshll.u32 [#allocation2], 4
      %s233 = int_to_ptr.vmem [resolvable:$true] %s232
      %238 = dma.vmem_to_hbm [thread:$0]  %s233, 512, %s5, [#allocation3], 128, 128, 8
    $region25: #{fn.1} parent=1 // pred_fallthru
      _
    // Predicated region
    $region26: #{fn.1} parent=1 // pred_check
      _
    $region27: #{fn.1} parent=1 // pred_check_branch
      %240 = sbr.rel (0) target = $region29
    $region28: #{fn.1} parent=1 // pred_region
      %241 = dma.done [#allocation3], 512
    $region29: #{fn.1} parent=1 // pred_fallthru
      _
    %242 = vsyncpa [#allocation3], 1

</llo_original>
